<compile_context>
chip_gen: v5e
topology: v5e:2x2
jax: 0.10.0
libtpu: 0.0.40
codegen_flags: <defaults>
</compile_context>

<pallas_src>
import functools

import jax
import jax.numpy as jnp
from jax.experimental import pallas as pl
from jax.experimental.pallas import tpu as pltpu


def _round_up(a, b):
    return pl.cdiv(a, b) * b


# ---------------------------------------------------------------------------
# Fused all-hop propagation + concat kernel.
# ---------------------------------------------------------------------------
def _fused_hops_kernel(a_ref, xw_ref, mask_ref, b_ref, o_ref):
    # a_ref:    (tn, tk)   bf16 adjacency tile for hop k, contraction chunk c
    # xw_ref:   (tk, Cpad) bf16 combined X @ [W_0^T | I | ...] chunk (hop-invariant)
    # mask_ref: (1, Cpad)  f32, 1.0 on hop k's column slab, 0 elsewhere
    # b_ref:    (1, Cpad)  f32 concatenated biases (zeros on passthrough / pad slabs)
    # o_ref:    (tn, Cpad) f32 output tile == resident accumulator (its block index is
    #                      constant along the hop / chunk reduction axes)
    k = pl.program_id(1)
    c = pl.program_id(2)

    @pl.when(jnp.logical_and(k == 0, c == 0))
    def _init():
        o_ref[...] = jnp.broadcast_to(b_ref[...], o_ref.shape)

    prod = jnp.dot(a_ref[...], xw_ref[...], preferred_element_type=jnp.float32)
    o_ref[...] += prod * mask_ref[...]


# ---------------------------------------------------------------------------
# Forward wrapper (mirrors ZengCell.forward)
# ---------------------------------------------------------------------------
@functools.partial(jax.jit, static_argnames=("k_hops", "tn", "tk", "compute_dtype"))
def zeng_cell_forward(x, adj_dist, weights, biases, *, k_hops, tn=128, tk=512,
                      compute_dtype=jnp.bfloat16):
    N, F = x.shape
    K = len(k_hops)
    assert tn % 8 == 0 and tk % 128 == 0

    widths = tuple(F if c == 3703 else c for c in k_hops)
    C_total = sum(widths)
    Cpad = _round_up(C_total, 128)          # lane-dense output width
    Npad = _round_up(N, tn)                 # row-tile-aligned node count
    Nc = _round_up(N, 128)                  # 128-aligned contraction dim
    tk_eff = min(tk, Nc)
    Nc = _round_up(Nc, tk_eff)              # make contraction divisible by the chunk size
    n_chunks = Nc // tk_eff

    # Combined pre-transposed weight / bias / per-hop column masks.
    # Passthrough hops (c == 3703) get an identity block: X @ I == X comes out of the
    # single XW matmul for free (no scatter on xw afterwards).
    w_all_t = jnp.zeros((F, Cpad), jnp.float32)
    bias_all = jnp.zeros((1, Cpad), jnp.float32)
    mask = jnp.zeros((K, 1, Cpad), jnp.float32)
    off = 0
    for k, c in enumerate(k_hops):
        w = widths[k]
        mask = mask.at[k, 0, off:off + w].set(1.0)
        if c == 3703:
            w_all_t = w_all_t.at[:, off:off + w].set(jnp.eye(F, dtype=jnp.float32))
        else:
            w_all_t = w_all_t.at[:, off:off + w].set(weights[k].T)   # transpose once, in the wrapper
            bias_all = bias_all.at[0, off:off + w].set(biases[k])
        off += w

    # Reassociated right factor, computed once in plain XLA (tiny: (N,F)x(F,Cpad)),
    # then zero-padded along the contraction dim and cast to the compute dtype.
    xw = jnp.dot(x, w_all_t, precision=jax.lax.Precision.HIGHEST)
    xw = jnp.pad(xw, ((0, Nc - N), (0, 0))).astype(compute_dtype)      # (Nc, Cpad)

    # Single zero-pad of the adjacency: rows -> Npad (tail tiles), cols -> Nc (128-
    # aligned contraction).  Padded xw rows are zero, so padded A columns are inert.
    adj_p = jnp.pad(adj_dist, ((0, 0), (0, Npad - N), (0, Nc - N))).astype(compute_dtype)

    cost = pl.CostEstimate(
        flops=2 * K * Npad * Nc * Cpad,
        transcendentals=0,
        bytes_accessed=(adj_p.size * adj_p.dtype.itemsize
                        + xw.size * xw.dtype.itemsize
                        + mask.size * 4 + bias_all.size * 4
                        + Npad * Cpad * 4),
    )

    out_pad = pl.pallas_call(
        _fused_hops_kernel,
        out_shape=jax.ShapeDtypeStruct((Npad, Cpad), jnp.float32),
        grid_spec=pltpu.PrefetchScalarGridSpec(
            num_scalar_prefetch=0,
            grid=(Npad // tn, K, n_chunks),          # reduction axes (hop, chunk) last
            in_specs=[
                pl.BlockSpec((None, tn, tk_eff), lambda i, k, c: (k, i, c)),
                pl.BlockSpec((tk_eff, Cpad), lambda i, k, c: (c, 0)),
                pl.BlockSpec((None, 1, Cpad), lambda i, k, c: (k, 0, 0)),
                pl.BlockSpec((1, Cpad), lambda i, k, c: (0, 0)),
            ],
            out_specs=pl.BlockSpec((tn, Cpad), lambda i, k, c: (i, 0)),
        ),
        compiler_params=pltpu.CompilerParams(
            dimension_semantics=("parallel", "arbitrary", "arbitrary"),
            vmem_limit_bytes=64 * 1024 * 1024),
        cost_estimate=cost,
    )(adj_p, xw, mask, bias_all)

    return out_pad[:N, :C_total]


# ---------------------------------------------------------------------------
# Parameter / input construction (deterministic, synthetic)
# ---------------------------------------------------------------------------
def init_params(key, k_hops, nfeat):
    weights, biases = [], []
    bound = 1.0 / float(nfeat) ** 0.5          # torch.nn.Linear default init range
    for c in k_hops:
        if c == 3703:
            # nn.Linear(nfeat, 3703) exists in the module but is never applied.
            weights.append(None)
            biases.append(None)
            continue
        key, kw, kb = jax.random.split(key, 3)
        weights.append(jax.random.uniform(kw, (c, nfeat), jnp.float32, -bound, bound))
        biases.append(jax.random.uniform(kb, (c,), jnp.float32, -bound, bound))
    return weights, biases


if __name__ == "__main__":
    N = 200                  # deliberately NOT a multiple of tn/128 -> exercises the single pad
    nfeat = 32               # input feature dim
    k_hops = (16, 3703, 8)   # action_list; 3703 triggers the passthrough branch

    key = jax.random.PRNGKey(0)
    key, kx, ka = jax.random.split(key, 3)
    x = jax.random.normal(kx, (N, nfeat), jnp.float32)
    # One (dense) adjacency per hop; row-normalized like a GCN propagation op.
    adj_raw = jax.random.uniform(ka, (len(k_hops), N, N), jnp.float32)
    adj_dist = adj_raw / jnp.sum(adj_raw, axis=-1, keepdims=True)

    weights, biases = init_params(key, k_hops, nfeat)

    out = zeng_cell_forward(x, adj_dist, weights, biases, k_hops=k_hops)
    out = jax.block_until_ready(out)

    # Pure-JAX reference of the same math (high-precision matmuls).
    hi = jax.lax.Precision.HIGHEST
    ref_slabs = []
    for k, c in enumerate(k_hops):
        low = jnp.matmul(adj_dist[k], x, precision=hi)
        if c == 3703:
            ref_slabs.append(low)
        else:
            ref_slabs.append(jnp.matmul(low, weights[k].T, precision=hi) + biases[k])
    ref = jnp.concatenate(ref_slabs, axis=1)

    assert out.shape == (N, 16 + nfeat + 8), out.shape
    max_err = float(jnp.max(jnp.abs(out - ref)))
    # bf16 A / XW operands with an f32 MXU accumulator -> loosened tolerance.
    assert jnp.allclose(out, ref, atol=2e-2, rtol=2e-2), max_err

    print("KERNEL_OK")
</pallas_src>

<mosaic_0001>
module attributes {stable_mosaic.version = 11 : i64} {
  func.func @_fused_hops_kernel(%arg0: i32, %arg1: i32, %arg2: i32, %arg3: memref<1x128x256xbf16, #tpu.memory_space<vmem>>, %arg4: memref<256x128xbf16, #tpu.memory_space<vmem>>, %arg5: memref<1x1x128xf32, #tpu.memory_space<vmem>>, %arg6: memref<1x128xf32, #tpu.memory_space<vmem>>, %arg7: memref<128x128xf32, #tpu.memory_space<vmem>>) attributes {dimension_semantics = [#tpu.dimension_semantics<parallel>, #tpu.dimension_semantics<arbitrary>, #tpu.dimension_semantics<arbitrary>], iteration_bounds = array<i64: 2, 3, 1>, scalar_prefetch = 0 : i64, scratch_operands = 0 : i64, tpu.core_type = #tpu.core_type<tc>, window_params = [{transform_indices = @transform_0, window_bounds = array<i64: 1, 128, 256>}, {transform_indices = @transform_1, window_bounds = array<i64: 256, 128>}, {transform_indices = @transform_2, window_bounds = array<i64: 1, 1, 128>}, {pipeline_mode = #tpu.pipeline_mode<synchronous>, transform_indices = @transform_3, window_bounds = array<i64: 1, 128>}, {transform_indices = @transform_4, window_bounds = array<i64: 128, 128>}]} {
    %c0_i32 = arith.constant 0 : i32
    %0 = arith.cmpi eq, %arg1, %c0_i32 : i32
    %c0_i32_0 = arith.constant 0 : i32
    %1 = arith.cmpi eq, %arg2, %c0_i32_0 : i32
    %2 = arith.andi %0, %1 : i1
    %3 = arith.extui %2 : i1 to i32
    %c0_i32_1 = arith.constant 0 : i32
    %4 = arith.cmpi ne, %3, %c0_i32_1 : i32
    scf.if %4 {
      %c0_13 = arith.constant 0 : index
      %c0_14 = arith.constant 0 : index
      %16 = vector.load %arg6[%c0_13, %c0_14] : memref<1x128xf32, #tpu.memory_space<vmem>>, vector<1x128xf32>
      %17 = vector.shape_cast %16 : vector<1x128xf32> to vector<1x128xf32>
      %18 = vector.broadcast %17 : vector<1x128xf32> to vector<128x128xf32>
      %c0_15 = arith.constant 0 : index
      %c0_16 = arith.constant 0 : index
      %19 = vector.load %arg7[%c0_15, %c0_16] : memref<128x128xf32, #tpu.memory_space<vmem>>, vector<128x128xf32>
      tpu.vector_store %arg7[%c0_15, %c0_16], %18 {strides = array<i32>} : memref<128x128xf32, #tpu.memory_space<vmem>>, vector<128x128xf32>,
    } else {
    }
    %c0 = arith.constant 0 : index
    %c0_2 = arith.constant 0 : index
    %c0_3 = arith.constant 0 : index
    %5 = vector.load %arg3[%c0, %c0_2, %c0_3] : memref<1x128x256xbf16, #tpu.memory_space<vmem>>, vector<1x128x256xbf16>
    %6 = vector.shape_cast %5 : vector<1x128x256xbf16> to vector<128x256xbf16>
    %c0_4 = arith.constant 0 : index
    %c0_5 = arith.constant 0 : index
    %7 = vector.load %arg4[%c0_4, %c0_5] : memref<256x128xbf16, #tpu.memory_space<vmem>>, vector<256x128xbf16>
    %cst = arith.constant dense<0.000000e+00> : vector<128x128xf32>
    %8 = tpu.matmul %6, %7, %cst {dimension_numbers = #tpu.dot_dimension_numbers<[1], [0], [0], [1], [0, 0, 1, 1], [], []>} : vector<128x256xbf16>, vector<256x128xbf16>, vector<128x128xf32> -> vector<128x128xf32>
    %c0_6 = arith.constant 0 : index
    %c0_7 = arith.constant 0 : index
    %9 = vector.load %arg7[%c0_6, %c0_7] : memref<128x128xf32, #tpu.memory_space<vmem>>, vector<128x128xf32>
    %c0_8 = arith.constant 0 : index
    %c0_9 = arith.constant 0 : index
    %c0_10 = arith.constant 0 : index
    %10 = vector.load %arg5[%c0_8, %c0_9, %c0_10] : memref<1x1x128xf32, #tpu.memory_space<vmem>>, vector<1x1x128xf32>
    %11 = vector.shape_cast %10 : vector<1x1x128xf32> to vector<1x128xf32>
    %12 = vector.broadcast %11 : vector<1x128xf32> to vector<128x128xf32>
    %13 = arith.mulf %8, %12 : vector<128x128xf32>
    %14 = arith.addf %9, %13 : vector<128x128xf32>
    %c0_11 = arith.constant 0 : index
    %c0_12 = arith.constant 0 : index
    %15 = vector.load %arg7[%c0_11, %c0_12] : memref<128x128xf32, #tpu.memory_space<vmem>>, vector<128x128xf32>
    tpu.vector_store %arg7[%c0_11, %c0_12], %14 {strides = array<i32>} : memref<128x128xf32, #tpu.memory_space<vmem>>, vector<128x128xf32>,
    return
  }
  func.func @transform_0(%arg0: i32, %arg1: i32, %arg2: i32) -> (i32, i32, i32) {
    %c0_i32 = arith.constant 0 : i32
    return %arg1, %arg0, %arg2 : i32, i32, i32
  }
  func.func @transform_1(%arg0: i32, %arg1: i32, %arg2: i32) -> (i32, i32) {
    %c0_i32 = arith.constant 0 : i32
    %c0_i32_0 = arith.constant 0 : i32
    return %arg2, %c0_i32 : i32, i32
  }
  func.func @transform_2(%arg0: i32, %arg1: i32, %arg2: i32) -> (i32, i32, i32) {
    %c0_i32 = arith.constant 0 : i32
    %c0_i32_0 = arith.constant 0 : i32
    %c0_i32_1 = arith.constant 0 : i32
    return %arg1, %c0_i32, %c0_i32_0 : i32, i32, i32
  }
  func.func @transform_3(%arg0: i32, %arg1: i32, %arg2: i32) -> (i32, i32) {
    %c0_i32 = arith.constant 0 : i32
    %c0_i32_0 = arith.constant 0 : i32
    %c0_i32_1 = arith.constant 0 : i32
    return %c0_i32, %c0_i32_0 : i32, i32
  }
  func.func @transform_4(%arg0: i32, %arg1: i32, %arg2: i32) -> (i32, i32) {
    %c0_i32 = arith.constant 0 : i32
    %c0_i32_0 = arith.constant 0 : i32
    return %arg0, %c0_i32 : i32, i32
  }
}

</mosaic_0001>

<llo_original>
// kernel: zeng_cell_forward.1
$region0: #{zeng_cell_forward.1}
  #allocation0 [shape = 'u32[]', space=smem, size = 0x4, offset = 0x4, fixed_abs, tag = 'smem constant byte address 0x4 - core index']
  #allocation1 [shape = 'u32[72,128]{1,0:T(1,128)}', space=vmem, size = 0x9000, scoped, tag = 'internal scratch']
  %s0 = inlined_call_operand.vmem [shape: bf16[3,256,256], index: 0, kind: input, shape index: {}]
  %s1 = inlined_call_operand.vmem [shape: bf16[256,128], index: 1, kind: input, shape index: {}]
  %s2 = inlined_call_operand.vmem [shape: f32[3,1,128], index: 2, kind: input, shape index: {}]
  %s3 = inlined_call_operand.vmem [shape: f32[1,128], index: 3, kind: input, shape index: {}]
  %s4 = inlined_call_operand.vmem [shape: f32[256,128], index: 4, kind: output, shape index: {}]
  %s5 = sld [smem:[#allocation0]]
  $region53: #{zeng_cell_forward.1} parent=0
    _
  %s7 = ssub.s32 1, %s5
  %s8 = scalar_select 0, %s7, %s5
  loop: start=0, step=1, limit=8
  $region2: #{zeng_cell_forward.1} parent=0 // loop_pre_header
    _
  $region3: #{zeng_cell_forward.1} parent=0 // loop_header
    %s10 = sphi 0, %s14
    %p11 = scmp.ge.s32.totalorder %s10, 8
    %s17 = sphi 0, %s36
    %s18 = sphi 0, %s32
    %s19 = sphi 0, %s28
    %s20 = sphi 0, %s17
    %s21 = sphi 0, %s18
    %s22 = sphi 0, %s19
    %s23 = sphi 0, %s20
    %s24 = sphi 0, %s21
    %s25 = sphi 0, %s22
    %s43 = sphi 0, %s45
    %s46 = sphi 0, %s43
    %s47 = sphi 0, %s46
    %s63 = sphi 0, %s47
    %s69 = sphi 0, %s71
    %s72 = sphi 0, %s69
    %s73 = sphi 0, %s72
    %s89 = sphi 0, %s73
    %s95 = sphi 0, %s97
    %s98 = sphi 0, %s95
    %s99 = sphi 0, %s98
    %s115 = sphi 0, %s99
    %s119 = sphi 0, %s119
    %s121 = sphi 0, %s119
    %s122 = sphi 0, %s121
    %s136 = sphi 0, %s122
    %s142 = sphi 0, %s144
    %s145 = sphi 0, %s142
    %s146 = sphi 0, %s145
    %s162 = sphi 0, %s146
  $region4: #{zeng_cell_forward.1} parent=0 // loop_header_branch
    %13 = sbr.rel (%p11) target = $region8
  $region5: #{zeng_cell_forward.1} parent=0 // loop_body
    %s15 = ssub.s32 %s10, 1
    %s16 = ssub.s32 %s10, 2
    %s26 = sadd.s32 1, %s19
    %p27 = scmp.ge.s32.totalorder %s26, 1
    %s28 = scalar_select %p27, 0, %s26
    %s29 = sadd.s32 1, %s18
    %s30 = scalar_select %p27, %s29, %s18
    %p31 = scmp.ge.s32.totalorder %s30, 3
    %s32 = scalar_select %p31, 0, %s30
    %s33 = sadd.s32 1, %s17
    %s34 = scalar_select %p31, %s33, %s17
    %p35 = scmp.ge.s32.totalorder %s34, 2
    %s36 = scalar_select %p35, 0, %s34
    %s37 = ssub.s32 %s18, %s32
    %s38 = ssub.s32 %s17, %s36
    %s39 = sor.u32 %s37, %s38
    %s40 = ssub.s32 %s19, %s28
    %s41 = sor.u32 %s39, %s40
    %p42 = scmp.eq.s32.totalorder %s41, 0
    %s44 = sadd.s32 %s43, 1
    %s45 = scalar_select %p42, %s43, %s44
    %p48 = pneg %p42
    %p49 = scmp.eq.s32.totalorder %s10, 5
    %p50 = por %p48, %p49
    %p51 = scmp.ne.s32.totalorder %s43, %s46
    %p52 = scmp.eq.s32.totalorder %s10, 0
    %p53 = por %p51, %p52
    %p54 = scmp.ne.s32.totalorder %s43, %s46
    %p55 = scmp.eq.s32.totalorder %s15, 5
    %p56 = por %p54, %p55
    %p57 = scmp.ne.s32.totalorder %s46, %s47
    %p58 = scmp.eq.s32.totalorder %s15, 0
    %p59 = por %p57, %p58
    %p60 = scmp.ne.s32.totalorder %s46, %s47
    %p61 = scmp.eq.s32.totalorder %s16, 5
    %p62 = por %p60, %p61
    %p64 = scmp.ne.s32.totalorder %s47, %s63
    %p65 = scmp.eq.s32.totalorder %s16, 0
    %p66 = por %p64, %p65
    %s67 = ssub.s32 %s19, %s28
    %p68 = scmp.eq.s32.totalorder %s67, 0
    %s70 = sadd.s32 %s69, 1
    %s71 = scalar_select %p68, %s69, %s70
    %p74 = pneg %p68
    %p75 = scmp.eq.s32.totalorder %s10, 5
    %p76 = por %p74, %p75
    %p77 = scmp.ne.s32.totalorder %s69, %s72
    %p78 = scmp.eq.s32.totalorder %s10, 0
    %p79 = por %p77, %p78
    %p80 = scmp.ne.s32.totalorder %s69, %s72
    %p81 = scmp.eq.s32.totalorder %s15, 5
    %p82 = por %p80, %p81
    %p83 = scmp.ne.s32.totalorder %s72, %s73
    %p84 = scmp.eq.s32.totalorder %s15, 0
    %p85 = por %p83, %p84
    %p86 = scmp.ne.s32.totalorder %s72, %s73
    %p87 = scmp.eq.s32.totalorder %s16, 5
    %p88 = por %p86, %p87
    %p90 = scmp.ne.s32.totalorder %s73, %s89
    %p91 = scmp.eq.s32.totalorder %s16, 0
    %p92 = por %p90, %p91
    %s93 = ssub.s32 %s18, %s32
    %p94 = scmp.eq.s32.totalorder %s93, 0
    %s96 = sadd.s32 %s95, 1
    %s97 = scalar_select %p94, %s95, %s96
    %p100 = pneg %p94
    %p101 = scmp.eq.s32.totalorder %s10, 5
    %p102 = por %p100, %p101
    %p103 = scmp.ne.s32.totalorder %s95, %s98
    %p104 = scmp.eq.s32.totalorder %s10, 0
    %p105 = por %p103, %p104
    %p106 = scmp.ne.s32.totalorder %s95, %s98
    %p107 = scmp.eq.s32.totalorder %s15, 5
    %p108 = por %p106, %p107
    %p109 = scmp.ne.s32.totalorder %s98, %s99
    %p110 = scmp.eq.s32.totalorder %s15, 0
    %p111 = por %p109, %p110
    %p112 = scmp.ne.s32.totalorder %s98, %s99
    %p113 = scmp.eq.s32.totalorder %s16, 5
    %p114 = por %p112, %p113
    %p116 = scmp.ne.s32.totalorder %s99, %s115
    %p117 = scmp.eq.s32.totalorder %s16, 0
    %p118 = por %p116, %p117
    %s120 = sadd.s32 %s119, 1
    %p123 = scmp.eq.s32.totalorder %s10, 5
    %p124 = scmp.ne.s32.totalorder %s119, %s121
    %p125 = scmp.eq.s32.totalorder %s10, 0
    %p126 = por %p124, %p125
    %p127 = scmp.ne.s32.totalorder %s119, %s121
    %p128 = scmp.eq.s32.totalorder %s15, 5
    %p129 = por %p127, %p128
    %p130 = scmp.ne.s32.totalorder %s121, %s122
    %p131 = scmp.eq.s32.totalorder %s15, 0
    %p132 = por %p130, %p131
    %p133 = scmp.ne.s32.totalorder %s121, %s122
    %p134 = scmp.eq.s32.totalorder %s16, 5
    %p135 = por %p133, %p134
    %p137 = scmp.ne.s32.totalorder %s122, %s136
    %p138 = scmp.eq.s32.totalorder %s16, 0
    %p139 = por %p137, %p138
    %s140 = ssub.s32 %s17, %s36
    %p141 = scmp.eq.s32.totalorder %s140, 0
    %s143 = sadd.s32 %s142, 1
    %s144 = scalar_select %p141, %s142, %s143
    %p147 = pneg %p141
    %p148 = scmp.eq.s32.totalorder %s10, 5
    %p149 = por %p147, %p148
    %p150 = scmp.ne.s32.totalorder %s142, %s145
    %p151 = scmp.eq.s32.totalorder %s10, 0
    %p152 = por %p150, %p151
    %p153 = scmp.ne.s32.totalorder %s142, %s145
    %p154 = scmp.eq.s32.totalorder %s15, 5
    %p155 = por %p153, %p154
    %p156 = scmp.ne.s32.totalorder %s145, %s146
    %p157 = scmp.eq.s32.totalorder %s15, 0
    %p158 = por %p156, %p157
    %p159 = scmp.ne.s32.totalorder %s145, %s146
    %p160 = scmp.eq.s32.totalorder %s16, 5
    %p161 = por %p159, %p160
    %p163 = scmp.ne.s32.totalorder %s146, %s162
    %p164 = scmp.eq.s32.totalorder %s16, 0
    %p165 = por %p163, %p164
    %p166 = scmp.le.s32.totalorder 1, %s10
    %p167 = scmp.lt.s32.totalorder %s10, 7
    %p168 = pnand %p166, %p167
    %p169 = pneg %p168
    // Predicated region
    $region9: #{zeng_cell_forward.1} parent=5 // pred_check
      _
    $region10: #{zeng_cell_forward.1} parent=5 // pred_check_branch
      %171 = sbr.rel (%p168) target = $region12
    $region11: #{zeng_cell_forward.1} parent=5 // pred_region
      %s172 = ssub.s32 %s10, 1
      // Predicated region
      $region13: #{zeng_cell_forward.1} parent=11 // pred_check
        %p173 = pneg %p85
      $region14: #{zeng_cell_forward.1} parent=11 // pred_check_branch
        %175 = sbr.rel (%p173) target = $region16
      $region15: #{zeng_cell_forward.1} parent=11 // pred_region
        %s176 = smul.u32 32, %s22
        %p177 = scmp.lt.s32.totalorder %s176, 31
        %s178 = scalar_select %p177, %s176, 31
        %s179 = smul.addr %s178, 4
        %s180 = scalar_lea.vmem %s1, %s179
        %s181 = smul.u32 32, %s22
      $region16: #{zeng_cell_forward.1} parent=11 // pred_fallthru
        _
      // Predicated region
      $region17: #{zeng_cell_forward.1} parent=11 // pred_check
        %p182 = pneg %p132
      $region18: #{zeng_cell_forward.1} parent=11 // pred_check_branch
        %184 = sbr.rel (%p182) target = $region20
      $region19: #{zeng_cell_forward.1} parent=11 // pred_region
        _
      $region20: #{zeng_cell_forward.1} parent=11 // pred_fallthru
        _
    $region12: #{zeng_cell_forward.1} parent=5 // pred_fallthru
      _
    %p185 = scmp.lt.s32.totalorder %s10, 6
    // Predicated region
    $region21: #{zeng_cell_forward.1} parent=5 // pred_check
      %p186 = pneg %p185
    $region22: #{zeng_cell_forward.1} parent=5 // pred_check_branch
      %188 = sbr.rel (%p186) target = $region24
    $region23: #{zeng_cell_forward.1} parent=5 // pred_region
      // Predicated region
      $region25: #{zeng_cell_forward.1} parent=23 // pred_check
        %p189 = pneg %p53
      $region26: #{zeng_cell_forward.1} parent=23 // pred_check_branch
        %191 = sbr.rel (%p189) target = $region28
      $region27: #{zeng_cell_forward.1} parent=23 // pred_region
        %s192 = smul.u32 16, %s17
        %s193 = smul.u32 2, %s19
        %p194 = scmp.lt.s32.totalorder %s18, 2
        %s195 = scalar_select %p194, %s18, 2
        %p196 = scmp.lt.s32.totalorder %s192, 31
        %s197 = scalar_select %p196, %s192, 31
        %p198 = scmp.lt.s32.totalorder %s193, 1
        %s199 = scalar_select %p198, %s193, 1
        %s200 = smul.addr %s197, 2
        %s201 = sadd.s32 %s199, %s200
        %s202 = smul.addr %s195, 64
        %s203 = sadd.s32 %s201, %s202
        %s204 = smul.addr %s203, 4
        %s205 = scalar_lea.vmem %s0, %s204
        %s206 = smul.u32 16, %s17
        %s207 = smul.u32 2, %s19
      $region28: #{zeng_cell_forward.1} parent=23 // pred_fallthru
        _
      // Predicated region
      $region29: #{zeng_cell_forward.1} parent=23 // pred_check
        %p208 = pneg %p105
      $region30: #{zeng_cell_forward.1} parent=23 // pred_check_branch
        %210 = sbr.rel (%p208) target = $region32
      $region31: #{zeng_cell_forward.1} parent=23 // pred_region
        %p211 = scmp.lt.s32.totalorder %s18, 2
        %s212 = scalar_select %p211, %s18, 2
        %s213 = scalar_lea.vmem %s2, %s212
      $region32: #{zeng_cell_forward.1} parent=23 // pred_fallthru
        _
    $region24: #{zeng_cell_forward.1} parent=5 // pred_fallthru
      _
    %p214 = scmp.le.s32.totalorder 1, %s10
    %p215 = scmp.lt.s32.totalorder %s10, 7
    %p216 = pnand %p214, %p215
    %p217 = pneg %p216
    // Predicated region
    $region33: #{zeng_cell_forward.1} parent=5 // pred_check
      _
    $region34: #{zeng_cell_forward.1} parent=5 // pred_check_branch
      %219 = sbr.rel (%p216) target = $region36
    $region35: #{zeng_cell_forward.1} parent=5 // pred_region
      %s220 = ssub.s32 %s10, 1
      %s221 = smul.u32 16, %s20
      %s222 = smul.u32 2, %s22
      %p223 = scmp.lt.s32.totalorder %s21, 2
      %s224 = scalar_select %p223, %s21, 2
      %p225 = scmp.lt.s32.totalorder %s221, 31
      %s226 = scalar_select %p225, %s221, 31
      %p227 = scmp.lt.s32.totalorder %s222, 1
      %s228 = scalar_select %p227, %s222, 1
      %s229 = smul.addr %s226, 2
      %s230 = sadd.s32 %s228, %s229
      %s231 = smul.addr %s224, 64
      %s232 = sadd.s32 %s230, %s231
      %s233 = smul.addr %s232, 4
      %s234 = scalar_lea.vmem %s0, %s233
      %p235 = pneg %p59
      %p236 = pneg %p56
      %s237 = smul.u32 32, %s22
      %p238 = scmp.lt.s32.totalorder %s237, 31
      %s239 = scalar_select %p238, %s237, 31
      %s240 = smul.addr %s239, 4
      %s241 = scalar_lea.vmem %s1, %s240
      %p242 = pneg %p85
      %p243 = pneg %p82
      %p244 = scmp.lt.s32.totalorder %s21, 2
      %s245 = scalar_select %p244, %s21, 2
      %s246 = scalar_lea.vmem %s2, %s245
      %p247 = pneg %p111
      %p248 = pneg %p108
      %p249 = pneg %p132
      %p250 = pneg %p129
      %p251 = pneg %p158
      %p252 = pneg %p155
      %s253 = smul.u32 16, %s20
      %p254 = scmp.lt.s32.totalorder %s253, 31
      %s255 = scalar_select %p254, %s253, 31
      %s256 = smul.addr %s255, 8
      %s257 = scalar_lea.vmem %s4, %s256
      %s258 = smul.u32 16, %s20
      %s259 = smul.u32 2, %s22
      %p260 = scmp.lt.s32.totalorder %s21, 2
      %s261 = scalar_select %p260, %s21, 2
      %p262 = scmp.lt.s32.totalorder %s258, 31
      %s263 = scalar_select %p262, %s258, 31
      %p264 = scmp.lt.s32.totalorder %s259, 1
      %s265 = scalar_select %p264, %s259, 1
      %s266 = smul.addr %s263, 2
      %s267 = sadd.s32 %s265, %s266
      %s268 = smul.addr %s261, 64
      %s269 = sadd.s32 %s267, %s268
      %s270 = smul.addr %s269, 4
      %s271 = scalar_lea.vmem %s0, %s270
      %s272 = smul.u32 16, %s20
      %s273 = smul.u32 2, %s22
      %s274 = smul.u32 32, %s22
      %p275 = scmp.lt.s32.totalorder %s274, 31
      %s276 = scalar_select %p275, %s274, 31
      %s277 = smul.addr %s276, 4
      %s278 = scalar_lea.vmem %s1, %s277
      %s279 = smul.u32 32, %s22
      %p280 = scmp.lt.s32.totalorder %s21, 2
      %s281 = scalar_select %p280, %s21, 2
      %s282 = scalar_lea.vmem %s2, %s281
      %s283 = smul.u32 16, %s20
      %p284 = scmp.lt.s32.totalorder %s283, 31
      %s285 = scalar_select %p284, %s283, 31
      %s286 = smul.addr %s285, 8
      %s287 = scalar_lea.vmem %s4, %s286
      %s288 = smul.u32 16, %s20
      %p289 = scmp.eq.s32.totalorder %s21, 0
      %p290 = scmp.eq.s32.totalorder %s22, 0
      %p291 = pnand %p289, %p290
      %p292 = pneg %p291
      // Predicated region
      $region37: #{zeng_cell_forward.1} parent=35 // pred_check
        _
      $region38: #{zeng_cell_forward.1} parent=35 // pred_check_branch
        %294 = sbr.rel (%p291) target = $region40
      $region39: #{zeng_cell_forward.1} parent=35 // pred_region
        %v295 = vld [vmem:[%s3] sm:$0x1]
        %v297 = vperm.slane %v295, 0
        %299 = vst [vmem:[%s287] sm:$0xff] %v297
        %300 = vst [vmem:[%s287 + $0x8] sm:$0xff] %v297
        %301 = vst [vmem:[%s287 + $0x10] sm:$0xff] %v297
        %302 = vst [vmem:[%s287 + $0x18] sm:$0xff] %v297
        %303 = vst [vmem:[%s287 + $0x20] sm:$0xff] %v297
        %304 = vst [vmem:[%s287 + $0x28] sm:$0xff] %v297
        %305 = vst [vmem:[%s287 + $0x30] sm:$0xff] %v297
        %306 = vst [vmem:[%s287 + $0x38] sm:$0xff] %v297
        %307 = vst [vmem:[%s287 + $0x40] sm:$0xff] %v297
        %308 = vst [vmem:[%s287 + $0x48] sm:$0xff] %v297
        %309 = vst [vmem:[%s287 + $0x50] sm:$0xff] %v297
        %310 = vst [vmem:[%s287 + $0x58] sm:$0xff] %v297
        %311 = vst [vmem:[%s287 + $0x60] sm:$0xff] %v297
        %312 = vst [vmem:[%s287 + $0x68] sm:$0xff] %v297
        %313 = vst [vmem:[%s287 + $0x70] sm:$0xff] %v297
        %314 = vst [vmem:[%s287 + $0x78] sm:$0xff] %v297
      $region40: #{zeng_cell_forward.1} parent=35 // pred_fallthru
        _
      %v315 = vld [vmem:[%s271] sm:$0xff]
      %v316 = vld [vmem:[%s271 + $0x8] sm:$0xff]
      %v317 = vld [vmem:[%s271 + $0x10] sm:$0xff]
      %v318 = vld [vmem:[%s271 + $0x18] sm:$0xff]
      %v319 = vld [vmem:[%s271 + $0x20] sm:$0xff]
      %v320 = vld [vmem:[%s271 + $0x28] sm:$0xff]
      %v321 = vld [vmem:[%s271 + $0x30] sm:$0xff]
      %v322 = vld [vmem:[%s271 + $0x38] sm:$0xff]
      %v323 = vld [vmem:[%s271 + $0x40] sm:$0xff]
      %v324 = vld [vmem:[%s271 + $0x48] sm:$0xff]
      %v325 = vld [vmem:[%s271 + $0x50] sm:$0xff]
      %v326 = vld [vmem:[%s271 + $0x58] sm:$0xff]
      %v327 = vld [vmem:[%s271 + $0x60] sm:$0xff]
      %v328 = vld [vmem:[%s271 + $0x68] sm:$0xff]
      %v329 = vld [vmem:[%s271 + $0x70] sm:$0xff]
      %v330 = vld [vmem:[%s271 + $0x78] sm:$0xff]
      %v331 = vld [vmem:[%s278] sm:$0xf]
      %v332 = vld [vmem:[%s278 + $0x4] sm:$0xf]
      %v333 = vld [vmem:[%s278 + $0x8] sm:$0xf]
      %v334 = vld [vmem:[%s278 + $0xc] sm:$0xf]
      %v335 = vld [vmem:[%s278 + $0x10] sm:$0xf]
      %v336 = vld [vmem:[%s278 + $0x14] sm:$0xf]
      %v337 = vld [vmem:[%s278 + $0x18] sm:$0xf]
      %v338 = vld [vmem:[%s278 + $0x1c] sm:$0xf]
      %v339 = vld [vmem:[%s278 + $0x20] sm:$0xf]
      %v340 = vld [vmem:[%s278 + $0x24] sm:$0xf]
      %v341 = vld [vmem:[%s278 + $0x28] sm:$0xf]
      %v342 = vld [vmem:[%s278 + $0x2c] sm:$0xf]
      %v343 = vld [vmem:[%s278 + $0x30] sm:$0xf]
      %v344 = vld [vmem:[%s278 + $0x34] sm:$0xf]
      %v345 = vld [vmem:[%s278 + $0x38] sm:$0xf]
      %v346 = vld [vmem:[%s278 + $0x3c] sm:$0xf]
      %v347 = vld [vmem:[%s278 + $0x40] sm:$0xf]
      %v348 = vld [vmem:[%s278 + $0x44] sm:$0xf]
      %v349 = vld [vmem:[%s278 + $0x48] sm:$0xf]
      %v350 = vld [vmem:[%s278 + $0x4c] sm:$0xf]
      %v351 = vld [vmem:[%s278 + $0x50] sm:$0xf]
      %v352 = vld [vmem:[%s278 + $0x54] sm:$0xf]
      %v353 = vld [vmem:[%s278 + $0x58] sm:$0xf]
      %v354 = vld [vmem:[%s278 + $0x5c] sm:$0xf]
      %v355 = vld [vmem:[%s278 + $0x60] sm:$0xf]
      %v356 = vld [vmem:[%s278 + $0x64] sm:$0xf]
      %v357 = vld [vmem:[%s278 + $0x68] sm:$0xf]
      %v358 = vld [vmem:[%s278 + $0x6c] sm:$0xf]
      %v359 = vld [vmem:[%s278 + $0x70] sm:$0xf]
      %v360 = vld [vmem:[%s278 + $0x74] sm:$0xf]
      %v361 = vld [vmem:[%s278 + $0x78] sm:$0xf]
      %v362 = vld [vmem:[%s278 + $0x7c] sm:$0xf]
      %v379 = vunpack.c.l.b16 %v315
      %v380 = vunpack.c.h.b16 %v315
      %v381 = vunpack.c.l.b16 %v316
      %v382 = vunpack.c.h.b16 %v316
      %v383 = vunpack.c.l.b16 %v317
      %v384 = vunpack.c.h.b16 %v317
      %v385 = vunpack.c.l.b16 %v318
      %v386 = vunpack.c.h.b16 %v318
      %v387 = vunpack.c.l.b16 %v319
      %v388 = vunpack.c.h.b16 %v319
      %v389 = vunpack.c.l.b16 %v320
      %v390 = vunpack.c.h.b16 %v320
      %v391 = vunpack.c.l.b16 %v321
      %v392 = vunpack.c.h.b16 %v321
      %v393 = vunpack.c.l.b16 %v322
      %v394 = vunpack.c.h.b16 %v322
      %v395 = vunpack.c.l.b16 %v323
      %v396 = vunpack.c.h.b16 %v323
      %v397 = vunpack.c.l.b16 %v324
      %v398 = vunpack.c.h.b16 %v324
      %v399 = vunpack.c.l.b16 %v325
      %v400 = vunpack.c.h.b16 %v325
      %v401 = vunpack.c.l.b16 %v326
      %v402 = vunpack.c.h.b16 %v326
      %v403 = vunpack.c.l.b16 %v327
      %v404 = vunpack.c.h.b16 %v327
      %v405 = vunpack.c.l.b16 %v328
      %v406 = vunpack.c.h.b16 %v328
      %v407 = vunpack.c.l.b16 %v329
      %v408 = vunpack.c.h.b16 %v329
      %v409 = vunpack.c.l.b16 %v330
      %v410 = vunpack.c.h.b16 %v330
      %v411 = vpack.c.b16 %v381, %v379
      %v412 = vpack.c.b16 %v382, %v380
      %v413 = vpack.c.b16 %v385, %v383
      %v414 = vpack.c.b16 %v386, %v384
      %v415 = vpack.c.b16 %v389, %v387
      %v416 = vpack.c.b16 %v390, %v388
      %v417 = vpack.c.b16 %v393, %v391
      %v418 = vpack.c.b16 %v394, %v392
      %v419 = vpack.c.b16 %v397, %v395
      %v420 = vpack.c.b16 %v398, %v396
      %v421 = vpack.c.b16 %v401, %v399
      %v422 = vpack.c.b16 %v402, %v400
      %v423 = vpack.c.b16 %v405, %v403
      %v424 = vpack.c.b16 %v406, %v404
      %v425 = vpack.c.b16 %v409, %v407
      %v426 = vpack.c.b16 %v410, %v408
      %v475 = vunpack.c.l.b16 %v331
      %v476 = vunpack.c.l.b16 %v332
      %v477 = vunpack.c.l.b16 %v333
      %v478 = vunpack.c.l.b16 %v334
      %v479 = vunpack.c.l.b16 %v335
      %v480 = vunpack.c.l.b16 %v336
      %v481 = vunpack.c.l.b16 %v337
      %v482 = vunpack.c.l.b16 %v338
      %v483 = vunpack.c.l.b16 %v339
      %v484 = vunpack.c.l.b16 %v340
      %v485 = vunpack.c.l.b16 %v341
      %v486 = vunpack.c.l.b16 %v342
      %v487 = vunpack.c.l.b16 %v343
      %v488 = vunpack.c.l.b16 %v344
      %v489 = vunpack.c.l.b16 %v345
      %v490 = vunpack.c.l.b16 %v346
      %v491 = vunpack.c.l.b16 %v347
      %v492 = vunpack.c.l.b16 %v348
      %v493 = vunpack.c.l.b16 %v349
      %v494 = vunpack.c.l.b16 %v350
      %v495 = vunpack.c.l.b16 %v351
      %v496 = vunpack.c.l.b16 %v352
      %v497 = vunpack.c.l.b16 %v353
      %v498 = vunpack.c.l.b16 %v354
      %v499 = vunpack.c.l.b16 %v355
      %v500 = vunpack.c.l.b16 %v356
      %v501 = vunpack.c.l.b16 %v357
      %v502 = vunpack.c.l.b16 %v358
      %v503 = vunpack.c.l.b16 %v359
      %v504 = vunpack.c.l.b16 %v360
      %v505 = vunpack.c.l.b16 %v361
      %v506 = vunpack.c.l.b16 %v362
      %v507 = vpack.c.b16 %v476, %v475
      %v508 = vpack.c.b16 %v478, %v477
      %v509 = vpack.c.b16 %v480, %v479
      %v510 = vpack.c.b16 %v482, %v481
      %v511 = vpack.c.b16 %v484, %v483
      %v512 = vpack.c.b16 %v486, %v485
      %v513 = vpack.c.b16 %v488, %v487
      %v514 = vpack.c.b16 %v490, %v489
      %v515 = vpack.c.b16 %v492, %v491
      %v516 = vpack.c.b16 %v494, %v493
      %v517 = vpack.c.b16 %v496, %v495
      %v518 = vpack.c.b16 %v498, %v497
      %v519 = vpack.c.b16 %v500, %v499
      %v520 = vpack.c.b16 %v502, %v501
      %v521 = vpack.c.b16 %v504, %v503
      %v522 = vpack.c.b16 %v506, %v505
      %539 = vmatpush.bf16.msra.mxu0 %v514
      %540 = vmatpush.bf16.msra.mxu0 %v513
      %541 = vmatpush.bf16.msra.mxu0 %v512
      %542 = vmatpush.bf16.msra.mxu0 %v511
      %543 = vmatpush.bf16.msra.mxu0 %v510
      %544 = vmatpush.bf16.msra.mxu0 %v509
      %545 = vmatpush.bf16.msra.mxu0 %v508
      %546 = vmatpush.bf16.msra.mxu0 %v507
      %547 = vmatmul.bf16.gmra.mxu0 %v411
      %v548 = vpop.f32.mrf.mxu0
      %v549 = vadd.f32 0.0, %v548
      %v550 = vpop.f32.mrf.mxu0
      %v551 = vadd.f32 0.0, %v550
      %552 = vmatmul.bf16.gmra.mxu0 %v413
      %v553 = vpop.f32.mrf.mxu0
      %v554 = vadd.f32 0.0, %v553
      %v555 = vpop.f32.mrf.mxu0
      %v556 = vadd.f32 0.0, %v555
      %557 = vmatmul.bf16.gmra.mxu0 %v415
      %v558 = vpop.f32.mrf.mxu0
      %v559 = vadd.f32 0.0, %v558
      %v560 = vpop.f32.mrf.mxu0
      %v561 = vadd.f32 0.0, %v560
      %562 = vmatmul.bf16.gmra.mxu0 %v417
      %v563 = vpop.f32.mrf.mxu0
      %v564 = vadd.f32 0.0, %v563
      %v565 = vpop.f32.mrf.mxu0
      %v566 = vadd.f32 0.0, %v565
      %567 = vmatmul.bf16.gmra.mxu0 %v419
      %v568 = vpop.f32.mrf.mxu0
      %v569 = vadd.f32 0.0, %v568
      %v570 = vpop.f32.mrf.mxu0
      %v571 = vadd.f32 0.0, %v570
      %572 = vmatmul.bf16.gmra.mxu0 %v421
      %v573 = vpop.f32.mrf.mxu0
      %v574 = vadd.f32 0.0, %v573
      %v575 = vpop.f32.mrf.mxu0
      %v576 = vadd.f32 0.0, %v575
      %577 = vmatmul.bf16.gmra.mxu0 %v423
      %v578 = vpop.f32.mrf.mxu0
      %v579 = vadd.f32 0.0, %v578
      %v580 = vpop.f32.mrf.mxu0
      %v581 = vadd.f32 0.0, %v580
      %582 = vmatmul.bf16.gmra.mxu0 %v425
      %v583 = vpop.f32.mrf.mxu0
      %v584 = vadd.f32 0.0, %v583
      %v585 = vpop.f32.mrf.mxu0
      %v586 = vadd.f32 0.0, %v585
      %587 = vdwg.mxu0
      %588 = vmatpush.bf16.msra.mxu0 %v522
      %589 = vmatpush.bf16.msra.mxu0 %v521
      %590 = vmatpush.bf16.msra.mxu0 %v520
      %591 = vmatpush.bf16.msra.mxu0 %v519
      %592 = vmatpush.bf16.msra.mxu0 %v518
      %593 = vmatpush.bf16.msra.mxu0 %v517
      %594 = vmatpush.bf16.msra.mxu0 %v516
      %595 = vmatpush.bf16.msra.mxu0 %v515
      %596 = vmatmul.bf16.gmra.mxu0 %v412
      %v597 = vpop.f32.mrf.mxu0
      %v598 = vadd.f32 %v549, %v597
      %v599 = vpop.f32.mrf.mxu0
      %v600 = vadd.f32 %v551, %v599
      %601 = vmatmul.bf16.gmra.mxu0 %v414
      %v602 = vpop.f32.mrf.mxu0
      %v603 = vadd.f32 %v554, %v602
      %v604 = vpop.f32.mrf.mxu0
      %v605 = vadd.f32 %v556, %v604
      %606 = vmatmul.bf16.gmra.mxu0 %v416
      %v607 = vpop.f32.mrf.mxu0
      %v608 = vadd.f32 %v559, %v607
      %v609 = vpop.f32.mrf.mxu0
      %v610 = vadd.f32 %v561, %v609
      %611 = vmatmul.bf16.gmra.mxu0 %v418
      %v612 = vpop.f32.mrf.mxu0
      %v613 = vadd.f32 %v564, %v612
      %v614 = vpop.f32.mrf.mxu0
      %v615 = vadd.f32 %v566, %v614
      %616 = vmatmul.bf16.gmra.mxu0 %v420
      %v617 = vpop.f32.mrf.mxu0
      %v618 = vadd.f32 %v569, %v617
      %v619 = vpop.f32.mrf.mxu0
      %v620 = vadd.f32 %v571, %v619
      %621 = vmatmul.bf16.gmra.mxu0 %v422
      %v622 = vpop.f32.mrf.mxu0
      %v623 = vadd.f32 %v574, %v622
      %v624 = vpop.f32.mrf.mxu0
      %v625 = vadd.f32 %v576, %v624
      %626 = vmatmul.bf16.gmra.mxu0 %v424
      %v627 = vpop.f32.mrf.mxu0
      %v628 = vadd.f32 %v579, %v627
      %v629 = vpop.f32.mrf.mxu0
      %v630 = vadd.f32 %v581, %v629
      %631 = vmatmul.bf16.gmra.mxu0 %v426
      %v632 = vpop.f32.mrf.mxu0
      %v633 = vadd.f32 %v584, %v632
      %v634 = vpop.f32.mrf.mxu0
      %v635 = vadd.f32 %v586, %v634
      %636 = vdwg.mxu0
      %v637 = vld [vmem:[%s287] sm:$0xff]
      %v638 = vld [vmem:[%s287 + $0x8] sm:$0xff]
      %v639 = vld [vmem:[%s287 + $0x10] sm:$0xff]
      %v640 = vld [vmem:[%s287 + $0x18] sm:$0xff]
      %v641 = vld [vmem:[%s287 + $0x20] sm:$0xff]
      %v642 = vld [vmem:[%s287 + $0x28] sm:$0xff]
      %v643 = vld [vmem:[%s287 + $0x30] sm:$0xff]
      %v644 = vld [vmem:[%s287 + $0x38] sm:$0xff]
      %v645 = vld [vmem:[%s287 + $0x40] sm:$0xff]
      %v646 = vld [vmem:[%s287 + $0x48] sm:$0xff]
      %v647 = vld [vmem:[%s287 + $0x50] sm:$0xff]
      %v648 = vld [vmem:[%s287 + $0x58] sm:$0xff]
      %v649 = vld [vmem:[%s287 + $0x60] sm:$0xff]
      %v650 = vld [vmem:[%s287 + $0x68] sm:$0xff]
      %v651 = vld [vmem:[%s287 + $0x70] sm:$0xff]
      %v652 = vld [vmem:[%s287 + $0x78] sm:$0xff]
      %v653 = vld [vmem:[%s282] sm:$0x1]
      %v655 = vperm.slane %v653, 0
      %v657 = vmul.f32 %v598, %v655
      %v658 = vmul.f32 %v600, %v655
      %v659 = vmul.f32 %v603, %v655
      %v660 = vmul.f32 %v605, %v655
      %v661 = vmul.f32 %v608, %v655
      %v662 = vmul.f32 %v610, %v655
      %v663 = vmul.f32 %v613, %v655
      %v664 = vmul.f32 %v615, %v655
      %v665 = vmul.f32 %v618, %v655
      %v666 = vmul.f32 %v620, %v655
      %v667 = vmul.f32 %v623, %v655
      %v668 = vmul.f32 %v625, %v655
      %v669 = vmul.f32 %v628, %v655
      %v670 = vmul.f32 %v630, %v655
      %v671 = vmul.f32 %v633, %v655
      %v672 = vmul.f32 %v635, %v655
      %v673 = vadd.f32 %v637, %v657
      %v674 = vadd.f32 %v638, %v658
      %v675 = vadd.f32 %v639, %v659
      %v676 = vadd.f32 %v640, %v660
      %v677 = vadd.f32 %v641, %v661
      %v678 = vadd.f32 %v642, %v662
      %v679 = vadd.f32 %v643, %v663
      %v680 = vadd.f32 %v644, %v664
      %v681 = vadd.f32 %v645, %v665
      %v682 = vadd.f32 %v646, %v666
      %v683 = vadd.f32 %v647, %v667
      %v684 = vadd.f32 %v648, %v668
      %v685 = vadd.f32 %v649, %v669
      %v686 = vadd.f32 %v650, %v670
      %v687 = vadd.f32 %v651, %v671
      %v688 = vadd.f32 %v652, %v672
      %689 = vst [vmem:[%s287] sm:$0xff] %v673
      %690 = vst [vmem:[%s287 + $0x8] sm:$0xff] %v674
      %691 = vst [vmem:[%s287 + $0x10] sm:$0xff] %v675
      %692 = vst [vmem:[%s287 + $0x18] sm:$0xff] %v676
      %693 = vst [vmem:[%s287 + $0x20] sm:$0xff] %v677
      %694 = vst [vmem:[%s287 + $0x28] sm:$0xff] %v678
      %695 = vst [vmem:[%s287 + $0x30] sm:$0xff] %v679
      %696 = vst [vmem:[%s287 + $0x38] sm:$0xff] %v680
      %697 = vst [vmem:[%s287 + $0x40] sm:$0xff] %v681
      %698 = vst [vmem:[%s287 + $0x48] sm:$0xff] %v682
      %699 = vst [vmem:[%s287 + $0x50] sm:$0xff] %v683
      %700 = vst [vmem:[%s287 + $0x58] sm:$0xff] %v684
      %701 = vst [vmem:[%s287 + $0x60] sm:$0xff] %v685
      %702 = vst [vmem:[%s287 + $0x68] sm:$0xff] %v686
      %703 = vst [vmem:[%s287 + $0x70] sm:$0xff] %v687
      %704 = vst [vmem:[%s287 + $0x78] sm:$0xff] %v688
      %s705 = smul.u32 16, %s20
      %p706 = scmp.lt.s32.totalorder %s705, 31
      %s707 = scalar_select %p706, %s705, 31
      %s708 = smul.addr %s707, 8
      %s709 = scalar_lea.vmem %s4, %s708
      // Predicated region
      $region41: #{zeng_cell_forward.1} parent=35 // pred_check
        %p710 = pneg %p155
      $region42: #{zeng_cell_forward.1} parent=35 // pred_check_branch
        %712 = sbr.rel (%p710) target = $region44
      $region43: #{zeng_cell_forward.1} parent=35 // pred_region
        %s713 = smul.u32 16, %s20
      $region44: #{zeng_cell_forward.1} parent=35 // pred_fallthru
        _
    $region36: #{zeng_cell_forward.1} parent=5 // pred_fallthru
      _
    %p714 = scmp.le.s32.totalorder 2, %s10
    // Predicated region
    $region45: #{zeng_cell_forward.1} parent=5 // pred_check
      %p715 = pneg %p714
    $region46: #{zeng_cell_forward.1} parent=5 // pred_check_branch
      %717 = sbr.rel (%p715) target = $region48
    $region47: #{zeng_cell_forward.1} parent=5 // pred_region
      %s718 = ssub.s32 %s10, 2
      // Predicated region
      $region49: #{zeng_cell_forward.1} parent=47 // pred_check
        %p719 = pneg %p161
      $region50: #{zeng_cell_forward.1} parent=47 // pred_check_branch
        %721 = sbr.rel (%p719) target = $region52
      $region51: #{zeng_cell_forward.1} parent=47 // pred_region
        %s722 = smul.u32 16, %s23
        %p723 = scmp.lt.s32.totalorder %s722, 31
        %s724 = scalar_select %p723, %s722, 31
        %s725 = smul.addr %s724, 8
        %s726 = scalar_lea.vmem %s4, %s725
      $region52: #{zeng_cell_forward.1} parent=47 // pred_fallthru
        _
    $region48: #{zeng_cell_forward.1} parent=5 // pred_fallthru
      _
  $region6: #{zeng_cell_forward.1} parent=0 // loop_footer
    %s14 = sadd.s32 1, %s10
  $region7: #{zeng_cell_forward.1} parent=0 // loop_footer_branch
    %9 = sbr.rel target = $region3
  $region8: #{zeng_cell_forward.1} parent=0 // loop_exit
    _

</llo_original>
